<compile_context>
chip_gen: v7x
topology: tpu7x:2x2x1
jax: 0.10.0
libtpu: 0.0.40
codegen_flags: <defaults>
</compile_context>

<pallas_src>
import functools

import jax
import jax.numpy as jnp
from jax.experimental import pallas as pl
from jax.experimental.pallas import tpu as pltpu


_LANE = 128
_VMEM_LIMIT_BYTES = 48 * 1024 * 1024   # < 64 MiB physical on v7x; well under v5e/v6e
_VMEM_TILE_BUDGET = 40 * 1024 * 1024   # double-buffered in+out tiles kept under this


def _round_up(n, m):
    return ((n + m - 1) // m) * m


def _sublane(dtype):
    # rows-per-sublane packing: f32 -> 8, bf16/f16 -> 16, int8/fp8 -> 32
    return {4: 8, 2: 16, 1: 32}.get(jnp.dtype(dtype).itemsize, 8)


def _choose_block_rows(b_padded, f_padded, in_dtype, out_dtype, sub):
    """Largest sublane-aligned row tile that keeps double-buffered in+out tiles
    within the VMEM budget, capped at 1024 rows, and keeping >= 2 grid steps
    when possible so both v7x TensorCores are fed."""
    per_row = 2 * f_padded * (
        jnp.dtype(in_dtype).itemsize + jnp.dtype(out_dtype).itemsize
    )
    cap = max(sub, (_VMEM_TILE_BUDGET // per_row) // sub * sub)
    cap = min(cap, 1024)
    if b_padded > sub:
        half = _round_up((b_padded + 1) // 2, sub)
        cap = min(cap, max(sub, half))
    return max(sub, min(cap, b_padded))


def _layernorm_kernel(*refs, eps, n_valid, n_padded, use_scale, use_center):
    refs = list(refs)
    x_ref = refs.pop(0)
    scale_ref = refs.pop(0) if use_scale else None
    center_ref = refs.pop(0) if use_center else None
    o_ref = refs.pop(0)

    x = x_ref[...].astype(jnp.float32)                       # (tb, Fp)

    valid = None
    if n_padded != n_valid:
        col = jax.lax.broadcasted_iota(jnp.int32, x.shape, dimension=1)
        valid = col < n_valid
        x = jnp.where(valid, x, 0.0)

    mean = jnp.sum(x, axis=-1, keepdims=True) * jnp.float32(1.0 / n_valid)
    diff = x - mean
    if valid is not None:
        diff = jnp.where(valid, diff, 0.0)

    # torch.std default: unbiased estimator (divide by N-1).
    # TODO(synk): for features == 1 torch.std returns NaN; we clamp the
    # denominator to 1 to stay finite instead of reproducing the NaN.
    denom = n_valid - 1 if n_valid > 1 else 1
    var = jnp.sum(diff * diff, axis=-1, keepdims=True) * jnp.float32(1.0 / denom)
    std = jnp.sqrt(var)

    # Exact (tb,1) reciprocal + broadcast multiply instead of a (tb,F) divide.
    inv = pl.reciprocal(std + jnp.float32(eps), approx=False)
    out = diff * inv

    if use_scale:
        out = out * scale_ref[...]                           # (1, Fp) broadcast, f32
    if use_center:
        out = out + center_ref[...]                          # (1, Fp) broadcast, f32

    o_ref[...] = out.astype(o_ref.dtype)


def layer_norm(x, scale_param=None, center_param=None, *, eps=1e-6,
               center=True, scale=False, block_rows=None):
    """x: (B, F). scale_param/center_param: (F,) arrays; only the ones enabled
    by `scale` / `center` are actually passed into the kernel."""
    assert x.ndim == 2, "simple 1D LayerNorm expects (batch, features)"
    B, F = x.shape
    out_dtype = x.dtype

    sub = _sublane(x.dtype)
    Fp = _round_up(F, _LANE)                  # lane-dense stores
    Bp0 = _round_up(B, sub)

    if block_rows is None:
        block_rows = _choose_block_rows(Bp0, Fp, x.dtype, out_dtype, sub)
    block_rows = max(sub, _round_up(block_rows, sub))
    Bp = _round_up(B, block_rows)

    xp = x
    if (Bp, Fp) != (B, F):
        xp = jnp.pad(x, ((0, Bp - B), (0, Fp - F)))   # zero pad: padded rows stay finite

    inputs = [xp]
    in_specs = [pl.BlockSpec((block_rows, Fp), lambda i: (i, 0))]
    if scale:
        s = jnp.pad(scale_param.astype(jnp.float32).reshape(1, F),
                    ((0, 0), (0, Fp - F)))
        inputs.append(s)
        in_specs.append(pl.BlockSpec((1, Fp), lambda i: (0, 0)))
    if center:
        c = jnp.pad(center_param.astype(jnp.float32).reshape(1, F),
                    ((0, 0), (0, Fp - F)))
        inputs.append(c)
        in_specs.append(pl.BlockSpec((1, Fp), lambda i: (0, 0)))

    kernel = functools.partial(
        _layernorm_kernel, eps=eps, n_valid=F, n_padded=Fp,
        use_scale=scale, use_center=center,
    )

    out = pl.pallas_call(
        kernel,
        out_shape=jax.ShapeDtypeStruct((Bp, Fp), out_dtype),
        grid_spec=pltpu.PrefetchScalarGridSpec(
            num_scalar_prefetch=0,
            grid=(Bp // block_rows,),
            in_specs=in_specs,
            out_specs=pl.BlockSpec((block_rows, Fp), lambda i: (i, 0)),
        ),
        compiler_params=pltpu.CompilerParams(
            dimension_semantics=("parallel",),
            vmem_limit_bytes=_VMEM_LIMIT_BYTES,
        ),
    )(*inputs)

    if (Bp, Fp) != (B, F):
        out = out[:B, :F]
    return out


if __name__ == "__main__":
    key = jax.random.PRNGKey(0)
    B, F = 8, 32

    x = jax.random.normal(key, (B, F), dtype=jnp.float32)

    # Deterministic parameter init, matching the module's __init__:
    # scale_param = ones(features) (unused when scale=False),
    # center_param = zeros(features).
    scale_param = jnp.ones((F,), dtype=jnp.float32)
    center_param = jnp.zeros((F,), dtype=jnp.float32)

    out = layer_norm(x, scale_param, center_param,
                     eps=1e-6, center=True, scale=False)
    out = jax.block_until_ready(out)

    # Reference check in plain JAX (same unbiased-std semantics as torch.std).
    mean = jnp.mean(x, axis=-1, keepdims=True)
    std = jnp.sqrt(jnp.sum((x - mean) ** 2, axis=-1, keepdims=True) / (F - 1))
    ref = (x - mean) / (std + 1e-6) + center_param

    assert out.shape == (B, F)
    assert jnp.allclose(out, ref, atol=1e-5, rtol=1e-5)

    print("KERNEL_OK")
</pallas_src>

<mosaic_0001>
module attributes {stable_mosaic.version = 11 : i64} {
  func.func @_layernorm_kernel(%arg0: i32, %arg1: memref<8x128xf32, #tpu.memory_space<vmem>>, %arg2: memref<1x128xf32, #tpu.memory_space<vmem>>, %arg3: memref<8x128xf32, #tpu.memory_space<vmem>>) attributes {dimension_semantics = [#tpu.dimension_semantics<parallel>], iteration_bounds = array<i64: 1>, scalar_prefetch = 0 : i64, scratch_operands = 0 : i64, tpu.core_type = #tpu.core_type<tc>, window_params = [{transform_indices = @transform_0, window_bounds = array<i64: 8, 128>}, {pipeline_mode = #tpu.pipeline_mode<synchronous>, transform_indices = @transform_1, window_bounds = array<i64: 1, 128>}, {transform_indices = @transform_2, window_bounds = array<i64: 8, 128>}]} {
    %c0 = arith.constant 0 : index
    %c0_0 = arith.constant 0 : index
    %0 = vector.load %arg1[%c0, %c0_0] : memref<8x128xf32, #tpu.memory_space<vmem>>, vector<8x128xf32>
    %1 = tpu.iota {dimensions = array<i32: 1>} : vector<8x128xi32>
    %c32_i32 = arith.constant 32 : i32
    %2 = vector.broadcast %c32_i32 : i32 to vector<8x128xi32>
    %3 = arith.cmpi slt, %1, %2 : vector<8x128xi32>
    %cst = arith.constant 0.000000e+00 : f32
    %4 = vector.broadcast %cst : f32 to vector<8x128xf32>
    %5 = arith.select %3, %0, %4 : vector<8x128xi1>, vector<8x128xf32>
    %cst_1 = arith.constant dense<0.000000e+00> : vector<8xf32>
    %6 = vector.multi_reduction <add>, %5, %cst_1 [1] : vector<8x128xf32> to vector<8xf32>
    %7 = vector.shape_cast %6 : vector<8xf32> to vector<8x1xf32>
    %cst_2 = arith.constant 3.125000e-02 : f32
    %8 = vector.broadcast %cst_2 : f32 to vector<8x1xf32>
    %9 = arith.mulf %7, %8 : vector<8x1xf32>
    %10 = vector.broadcast %9 : vector<8x1xf32> to vector<8x128xf32>
    %11 = arith.subf %5, %10 : vector<8x128xf32>
    %cst_3 = arith.constant 0.000000e+00 : f32
    %12 = vector.broadcast %cst_3 : f32 to vector<8x128xf32>
    %13 = arith.select %3, %11, %12 : vector<8x128xi1>, vector<8x128xf32>
    %14 = arith.mulf %13, %13 : vector<8x128xf32>
    %cst_4 = arith.constant dense<0.000000e+00> : vector<8xf32>
    %15 = vector.multi_reduction <add>, %14, %cst_4 [1] : vector<8x128xf32> to vector<8xf32>
    %16 = vector.shape_cast %15 : vector<8xf32> to vector<8x1xf32>
    %cst_5 = arith.constant 0.0322580636 : f32
    %17 = vector.broadcast %cst_5 : f32 to vector<8x1xf32>
    %18 = arith.mulf %16, %17 : vector<8x1xf32>
    %19 = math.sqrt %18 : vector<8x1xf32>
    %cst_6 = arith.constant 9.99999997E-7 : f32
    %20 = vector.broadcast %cst_6 : f32 to vector<8x1xf32>
    %21 = arith.addf %19, %20 : vector<8x1xf32>
    %22 = tpu.reciprocal %21 : vector<8x1xf32> -> vector<8x1xf32>
    %23 = vector.broadcast %22 : vector<8x1xf32> to vector<8x128xf32>
    %24 = arith.mulf %13, %23 : vector<8x128xf32>
    %c0_7 = arith.constant 0 : index
    %c0_8 = arith.constant 0 : index
    %25 = vector.load %arg2[%c0_7, %c0_8] : memref<1x128xf32, #tpu.memory_space<vmem>>, vector<1x128xf32>
    %26 = vector.broadcast %25 : vector<1x128xf32> to vector<8x128xf32>
    %27 = arith.addf %24, %26 : vector<8x128xf32>
    %c0_9 = arith.constant 0 : index
    %c0_10 = arith.constant 0 : index
    %28 = vector.load %arg3[%c0_9, %c0_10] : memref<8x128xf32, #tpu.memory_space<vmem>>, vector<8x128xf32>
    tpu.vector_store %arg3[%c0_9, %c0_10], %27 {strides = array<i32>} : memref<8x128xf32, #tpu.memory_space<vmem>>, vector<8x128xf32>,
    return
  }
  func.func @transform_0(%arg0: i32) -> (i32, i32) {
    %c0_i32 = arith.constant 0 : i32
    %c0_i32_0 = arith.constant 0 : i32
    return %arg0, %c0_i32 : i32, i32
  }
  func.func @transform_1(%arg0: i32) -> (i32, i32) {
    %c0_i32 = arith.constant 0 : i32
    %c0_i32_0 = arith.constant 0 : i32
    %c0_i32_1 = arith.constant 0 : i32
    return %c0_i32, %c0_i32_0 : i32, i32
  }
  func.func @transform_2(%arg0: i32) -> (i32, i32) {
    %c0_i32 = arith.constant 0 : i32
    %c0_i32_0 = arith.constant 0 : i32
    return %arg0, %c0_i32 : i32, i32
  }
}

</mosaic_0001>

<llo_original>
// kernel: tpu_custom_call.1
$region0: #{tpu_custom_call.1}
  #allocation0 [shape = 'u32[]', space=smem, size = 0x4, offset = 0x4, fixed_abs, tag = 'smem constant byte address 0x4 - core index']
  #allocation1 [shape = 'u32[144,128]{1,0:T(1,128)}', space=vmem, size = 0x12000, scoped, tag = 'internal scratch']
  %s0 = inlined_call_operand.hbm [shape: f32[8,128], index: 0, kind: input, shape index: {}]
  %s1 = inlined_call_operand.vmem [shape: f32[1,128], index: 1, kind: input, shape index: {}]
  %s2 = inlined_call_operand.hbm [shape: f32[8,128], index: 2, kind: output, shape index: {}]
  %s3 = sld [smem:[#allocation0]]
  $region22: #{tpu_custom_call.1} parent=0
    _
  %s5 = ssub.s32 1, %s3
  %s6 = scalar_select 0, %s5, %s3
  $region1: #{tpu_custom_call.1} parent=0
    #allocation2 [shape = 'u8[4096]{0}', space=vmem, size = 0x1000, scoped, tag = 'input window, operand 0, single buffered']
    #allocation3 [shape = 's32[1]{0}', space=sflag, size = 0x4, scoped, tag = 'scoped memory for tpu_custom_call.1']
    #allocation4 [shape = 's32[1]{0}', space=sflag, size = 0x4, scoped, tag = 'scoped memory for tpu_custom_call.1']
    #allocation5 [shape = 'u8[4096]{0}', space=vmem, size = 0x1000, scoped, tag = 'output window, operand 0, single buffered']
    %7 = vsyncpa [#allocation3], 0
    %8 = vsyncpa [#allocation4], 0
    // Predicated region
    $region2: #{tpu_custom_call.1} parent=1 // pred_check
      _
    $region3: #{tpu_custom_call.1} parent=1 // pred_check_branch
      %10 = sbr.rel (0) target = $region5
    $region4: #{tpu_custom_call.1} parent=1 // pred_region
      %s12 = ssub.s32 128, 128
      %13 = vsyncadd [#allocation3], %s12
      %s15 = sshll.u32 [#allocation2], 4
      %s16 = int_to_ptr.vmem [resolvable:$true] %s15
      %18 = dma.hbm_to_vmem [thread:$0]  %s0, 128, %s16, [#allocation3]
    $region5: #{tpu_custom_call.1} parent=1 // pred_fallthru
      _
    // Predicated region
    $region6: #{tpu_custom_call.1} parent=1 // pred_check
      _
    $region7: #{tpu_custom_call.1} parent=1 // pred_check_branch
      %20 = sbr.rel (0) target = $region9
    $region8: #{tpu_custom_call.1} parent=1 // pred_region
      _
    $region9: #{tpu_custom_call.1} parent=1 // pred_fallthru
      _
    // Predicated region
    $region10: #{tpu_custom_call.1} parent=1 // pred_check
      _
    $region11: #{tpu_custom_call.1} parent=1 // pred_check_branch
      %22 = sbr.rel (0) target = $region13
    $region12: #{tpu_custom_call.1} parent=1 // pred_region
      %23 = dma.done [#allocation3], 128
    $region13: #{tpu_custom_call.1} parent=1 // pred_fallthru
      _
    %v24 = vld [vmem:[#allocation2] sm:$0xff]
    %v25 = vlaneseq
    %v26 = vand.u32 %v25, 127
    %vm27 = vcmp.lt.s32.totalorder %v26, 32
    %v28 = vsel %vm27, %v24, 0.0
    %29 = vadd.xlane.f32.xlu0 %v28
    %v30 = vpop.xlane.xlu0 %29
    %v31 = vmul.f32 %v30, 0.03125
    %v32 = vsub.f32 %v28, %v31
    %v33 = vsel %vm27, %v32, 0.0
    %v34 = vmul.f32 %v33, %v33
    %35 = vadd.xlane.f32.xlu0 %v34
    %v36 = vpop.xlane.xlu0 %35
    %v37 = vmul.f32 %v36, 0.032258064
    %v38 = vrsqrt.pop %v37
    %v39 = vmul.f32 %v37, %v38
    %vm40 = vcmp.eq.f32.partialorder %v37, inf
    %v41 = vsel %vm40, %v37, %v39
    %vm42 = vcmp.eq.f32.partialorder %v37, 0.0
    %v43 = vand.u32 %v37, 2147483648
    %v44 = vsel %vm42, %v43, %v41
    %v45 = vadd.f32 %v44, 1e-06
    %v46 = vrcp.pop %v45
    %v47 = vmul.f32 %v33, %v46
    %v48 = vld [vmem:[%s1] sm:$0x1]
    %v50 = vlaneseq
    %v51 = vshrl.u32 %v50, 7
    %v52 = vsub.s32 0, %v51
    %v53 = vrot.slane %v48, %v52
    %v55 = vadd.f32 %v47, %v53
    %56 = vst [vmem:[#allocation5] sm:$0xff] %v55
    // Predicated region
    $region14: #{tpu_custom_call.1} parent=1 // pred_check
      _
    $region15: #{tpu_custom_call.1} parent=1 // pred_check_branch
      %58 = sbr.rel (0) target = $region17
    $region16: #{tpu_custom_call.1} parent=1 // pred_region
      %s60 = ssub.s32 128, 128
      %61 = vsyncadd [#allocation4], %s60
      %s63 = sshll.u32 [#allocation5], 4
      %s64 = int_to_ptr.vmem [resolvable:$true] %s63
      %66 = dma.vmem_to_hbm [thread:$0]  %s64, 128, %s2, [#allocation4]
    $region17: #{tpu_custom_call.1} parent=1 // pred_fallthru
      _
    // Predicated region
    $region18: #{tpu_custom_call.1} parent=1 // pred_check
      _
    $region19: #{tpu_custom_call.1} parent=1 // pred_check_branch
      %68 = sbr.rel (0) target = $region21
    $region20: #{tpu_custom_call.1} parent=1 // pred_region
      %69 = dma.done [#allocation4], 128
    $region21: #{tpu_custom_call.1} parent=1 // pred_fallthru
      _
    %70 = vsyncpa [#allocation3], 1
    %71 = vsyncpa [#allocation4], 1

</llo_original>
